<compile_context>
chip_gen: v7x
topology: tpu7x:2x2x1
jax: 0.10.0
libtpu: 0.0.40
codegen_flags: <defaults>
</compile_context>

<pallas_src>
import functools

import numpy as np
import jax
import jax.numpy as jnp
from jax import lax
from jax.experimental import pallas as pl
from jax.experimental.pallas import tpu as pltpu


def _round_up(x, m):
    return (x + m - 1) // m * m


def _graph_norm_kernel(off_ref, cnt_ref,          # SMEM int32 (B,)  scalar prefetch
                       x_ref,                     # VMEM f32 (N_row, TD) features
                       w_ref, b_ref, ms_ref,      # VMEM f32 (1, TD) weight/bias/mean_scale
                       o_ref,                     # VMEM f32 (N_row, TD) output
                       *, eps, num_graphs, seg):
    w = w_ref[...]                                 # (1, TD)
    b = b_ref[...]                                 # (1, TD)
    ms = ms_ref[...]                               # (1, TD)
    row_ids = lax.broadcasted_iota(jnp.int32, (seg, 1), 0)   # (SEG, 1)

    def body(g, carry):
        off = off_ref[g]                           # scalar int32 row offset
        cnt = cnt_ref[g]                           # scalar int32 node count
        xw = x_ref[pl.ds(off, seg), :]             # (SEG, TD) this graph's window
        maskf = (row_ids < cnt).astype(xw.dtype)   # (SEG, 1) valid-row mask
        inv_cnt = 1.0 / jnp.maximum(cnt.astype(xw.dtype), 1.0)   # guard cnt==0

        mean = jnp.sum(xw * maskf, axis=0, keepdims=True) * inv_cnt      # (1, TD)
        ctr = xw - mean * ms                                             # (SEG, TD)
        var = jnp.sum(ctr * ctr * maskf, axis=0, keepdims=True) * inv_cnt
        scale = w * lax.rsqrt(var + eps)                                 # (1, TD)

        # Unmasked lane-dense store: rows past this graph's count are rewritten
        # by the later graph that owns them; rows past N land in padding.
        o_ref[pl.ds(off, seg), :] = ctr * scale + b
        return carry

    lax.fori_loop(0, num_graphs, body, 0, unroll=num_graphs <= 8)


def graph_norm(features, batch_num_nodes, weight, bias, mean_scale, eps=1e-5):
    """Pallas GraphNorm.

    features:        (N, D) float32
    batch_num_nodes: (B,)   int   (host-side graph metadata, sums to N)
    weight/bias/mean_scale: (D,) float32
    """
    N, D = features.shape
    counts_np = np.asarray(batch_num_nodes, dtype=np.int32)
    B = int(counts_np.shape[0])
    offsets_np = np.zeros((B,), dtype=np.int32)
    if B > 1:
        offsets_np[1:] = np.cumsum(counts_np[:-1], dtype=np.int64).astype(np.int32)
    seg = _round_up(max(int(counts_np.max()) if B > 0 else 1, 1), 8)

    # Pad rows so every per-graph window (offset_g + SEG) stays in-bounds.
    n_row = _round_up(N + seg, 8)

    # Lane-dense feature tiling: TD in {512, 256, 128}, shrunk so one fp32
    # (n_row, TD) block stays small enough to double-buffer even on v5e.
    td = 512
    while td > 128 and (td > _round_up(D, 128) or n_row * td * 4 > (2 << 20)):
        td //= 2
    d_pad = _round_up(D, td)

    dt = features.dtype
    x_p = jnp.pad(features, ((0, n_row - N), (0, d_pad - D)))
    w_p = jnp.pad(weight.astype(dt), (0, d_pad - D)).reshape(1, d_pad)
    b_p = jnp.pad(bias.astype(dt), (0, d_pad - D)).reshape(1, d_pad)
    ms_p = jnp.pad(mean_scale.astype(dt), (0, d_pad - D)).reshape(1, d_pad)

    kernel = functools.partial(_graph_norm_kernel, eps=float(eps),
                               num_graphs=B, seg=seg)

    out = pl.pallas_call(
        kernel,
        out_shape=jax.ShapeDtypeStruct((n_row, d_pad), dt),
        grid_spec=pltpu.PrefetchScalarGridSpec(
            num_scalar_prefetch=2,
            grid=(d_pad // td,),
            in_specs=[
                pl.BlockSpec((n_row, td), lambda d, off, cnt: (0, d)),  # features
                pl.BlockSpec((1, td), lambda d, off, cnt: (0, d)),      # weight
                pl.BlockSpec((1, td), lambda d, off, cnt: (0, d)),      # bias
                pl.BlockSpec((1, td), lambda d, off, cnt: (0, d)),      # mean_scale
            ],
            out_specs=pl.BlockSpec((n_row, td), lambda d, off, cnt: (0, d)),
        ),
        compiler_params=pltpu.CompilerParams(
            dimension_semantics=("parallel",)),
    )(jnp.asarray(offsets_np), jnp.asarray(counts_np), x_p, w_p, b_p, ms_p)

    return out[:N, :D]


def graph_norm_ref(features, batch_num_nodes, weight, bias, mean_scale, eps=1e-5):
    """Plain-JAX reference mirroring the PyTorch GraphNorm.forward semantics."""
    N, D = features.shape
    B = batch_num_nodes.shape[0]
    seg = jnp.repeat(jnp.arange(B), batch_num_nodes, total_repeat_length=N)
    cnt = batch_num_nodes.astype(features.dtype)[:, None]
    mean = jax.ops.segment_sum(features, seg, num_segments=B) / cnt
    out = features - mean[seg] * mean_scale
    var = jax.ops.segment_sum(out * out, seg, num_segments=B) / cnt
    std = jnp.sqrt(var + eps)[seg]
    return weight * out / std + bias


def _run_case(key, batch_num_nodes, D):
    k_x, k_w, k_b, k_m = jax.random.split(key, 4)
    N = int(np.asarray(batch_num_nodes).sum())
    features = jax.random.normal(k_x, (N, D), dtype=jnp.float32)
    weight = jnp.ones((D,), jnp.float32) + 0.1 * jax.random.normal(k_w, (D,))
    bias = jnp.zeros((D,), jnp.float32) + 0.1 * jax.random.normal(k_b, (D,))
    mean_scale = jnp.ones((D,), jnp.float32) + 0.1 * jax.random.normal(k_m, (D,))

    out = graph_norm(features, batch_num_nodes, weight, bias, mean_scale)
    out = jax.block_until_ready(out)

    ref = graph_norm_ref(features, batch_num_nodes, weight, bias, mean_scale)
    assert out.shape == (N, D) and out.dtype == jnp.float32
    assert jnp.allclose(out, ref, atol=1e-5, rtol=1e-5), "mismatch vs reference"


if __name__ == "__main__":
    key = jax.random.PRNGKey(0)
    k1, k2 = jax.random.split(key)

    # Case 1: 3 graphs, D=32 (padded to 128 lanes, single D tile).
    _run_case(k1, jnp.array([5, 7, 4], dtype=jnp.int32), D=32)

    # Case 2: unbalanced graphs, D=300 (padded, multi-tile parallel grid).
    _run_case(k2, jnp.array([1, 9, 2, 4], dtype=jnp.int32), D=300)

    print("KERNEL_OK")
</pallas_src>

<mosaic_0001>
module attributes {stable_mosaic.version = 11 : i64} {
  func.func @_graph_norm_kernel(%arg0: i32, %arg1: memref<3xi32, #tpu.memory_space<smem>>, %arg2: memref<3xi32, #tpu.memory_space<smem>>, %arg3: memref<24x128xf32, #tpu.memory_space<vmem>>, %arg4: memref<1x128xf32, #tpu.memory_space<vmem>>, %arg5: memref<1x128xf32, #tpu.memory_space<vmem>>, %arg6: memref<1x128xf32, #tpu.memory_space<vmem>>, %arg7: memref<24x128xf32, #tpu.memory_space<vmem>>) attributes {dimension_semantics = [#tpu.dimension_semantics<parallel>], iteration_bounds = array<i64: 1>, scalar_prefetch = 2 : i64, scratch_operands = 0 : i64, tpu.core_type = #tpu.core_type<tc>, window_params = [{transform_indices = @transform_0, window_bounds = array<i64: 24, 128>}, {transform_indices = @transform_1, window_bounds = array<i64: 1, 128>}, {transform_indices = @transform_2, window_bounds = array<i64: 1, 128>}, {transform_indices = @transform_3, window_bounds = array<i64: 1, 128>}, {transform_indices = @transform_4, window_bounds = array<i64: 24, 128>}]} {
    %c0 = arith.constant 0 : index
    %c0_0 = arith.constant 0 : index
    %0 = vector.load %arg4[%c0, %c0_0] : memref<1x128xf32, #tpu.memory_space<vmem>>, vector<1x128xf32>
    %c0_1 = arith.constant 0 : index
    %c0_2 = arith.constant 0 : index
    %1 = vector.load %arg5[%c0_1, %c0_2] : memref<1x128xf32, #tpu.memory_space<vmem>>, vector<1x128xf32>
    %c0_3 = arith.constant 0 : index
    %c0_4 = arith.constant 0 : index
    %2 = vector.load %arg6[%c0_3, %c0_4] : memref<1x128xf32, #tpu.memory_space<vmem>>, vector<1x128xf32>
    %3 = tpu.iota {dimensions = array<i32: 0>} : vector<8x1xi32>
    %c0_i32 = arith.constant 0 : i32
    %4 = arith.index_cast %c0_i32 : i32 to index
    %5 = memref.load %arg1[%4] : memref<3xi32, #tpu.memory_space<smem>>
    %6 = arith.index_cast %c0_i32 : i32 to index
    %7 = memref.load %arg2[%6] : memref<3xi32, #tpu.memory_space<smem>>
    %8 = arith.index_cast %5 : i32 to index
    %c0_5 = arith.constant 0 : index
    %9 = vector.load %arg3[%8, %c0_5] : memref<24x128xf32, #tpu.memory_space<vmem>>, vector<8x128xf32>
    %10 = vector.broadcast %7 : i32 to vector<8x1xi32>
    %11 = arith.cmpi slt, %3, %10 : vector<8x1xi32>
    %12 = arith.extui %11 : vector<8x1xi1> to vector<8x1xi32>
    %13 = arith.sitofp %12 : vector<8x1xi32> to vector<8x1xf32>
    %14 = arith.sitofp %7 : i32 to f32
    %cst = arith.constant 1.000000e+00 : f32
    %15 = arith.maximumf %14, %cst : f32
    %cst_6 = arith.constant 1.000000e+00 : f32
    %16 = arith.divf %cst_6, %15 : f32
    %17 = vector.broadcast %13 : vector<8x1xf32> to vector<8x128xf32>
    %18 = arith.mulf %9, %17 : vector<8x128xf32>
    %cst_7 = arith.constant dense<0.000000e+00> : vector<128xf32>
    %19 = vector.multi_reduction <add>, %18, %cst_7 [0] : vector<8x128xf32> to vector<128xf32>
    %20 = vector.shape_cast %19 : vector<128xf32> to vector<1x128xf32>
    %21 = vector.broadcast %16 : f32 to vector<1x128xf32>
    %22 = arith.mulf %20, %21 : vector<1x128xf32>
    %23 = arith.mulf %22, %2 : vector<1x128xf32>
    %24 = vector.broadcast %23 : vector<1x128xf32> to vector<8x128xf32>
    %25 = arith.subf %9, %24 : vector<8x128xf32>
    %26 = arith.mulf %25, %25 : vector<8x128xf32>
    %27 = vector.broadcast %13 : vector<8x1xf32> to vector<8x128xf32>
    %28 = arith.mulf %26, %27 : vector<8x128xf32>
    %cst_8 = arith.constant dense<0.000000e+00> : vector<128xf32>
    %29 = vector.multi_reduction <add>, %28, %cst_8 [0] : vector<8x128xf32> to vector<128xf32>
    %30 = vector.shape_cast %29 : vector<128xf32> to vector<1x128xf32>
    %31 = vector.broadcast %16 : f32 to vector<1x128xf32>
    %32 = arith.mulf %30, %31 : vector<1x128xf32>
    %cst_9 = arith.constant 9.99999974E-6 : f32
    %33 = vector.broadcast %cst_9 : f32 to vector<1x128xf32>
    %34 = arith.addf %32, %33 : vector<1x128xf32>
    %35 = math.rsqrt %34 : vector<1x128xf32>
    %36 = arith.mulf %0, %35 : vector<1x128xf32>
    %37 = vector.broadcast %36 : vector<1x128xf32> to vector<8x128xf32>
    %38 = arith.mulf %25, %37 : vector<8x128xf32>
    %39 = vector.broadcast %1 : vector<1x128xf32> to vector<8x128xf32>
    %40 = arith.addf %38, %39 : vector<8x128xf32>
    %41 = arith.index_cast %5 : i32 to index
    %c0_10 = arith.constant 0 : index
    %42 = vector.load %arg7[%41, %c0_10] : memref<24x128xf32, #tpu.memory_space<vmem>>, vector<8x128xf32>
    tpu.vector_store %arg7[%41, %c0_10], %40 {strides = array<i32>} : memref<24x128xf32, #tpu.memory_space<vmem>>, vector<8x128xf32>,
    %c1_i32 = arith.constant 1 : i32
    %43 = arith.index_cast %c1_i32 : i32 to index
    %44 = memref.load %arg1[%43] : memref<3xi32, #tpu.memory_space<smem>>
    %45 = arith.index_cast %c1_i32 : i32 to index
    %46 = memref.load %arg2[%45] : memref<3xi32, #tpu.memory_space<smem>>
    %47 = arith.index_cast %44 : i32 to index
    %c0_11 = arith.constant 0 : index
    %48 = vector.load %arg3[%47, %c0_11] : memref<24x128xf32, #tpu.memory_space<vmem>>, vector<8x128xf32>
    %49 = vector.broadcast %46 : i32 to vector<8x1xi32>
    %50 = arith.cmpi slt, %3, %49 : vector<8x1xi32>
    %51 = arith.extui %50 : vector<8x1xi1> to vector<8x1xi32>
    %52 = arith.sitofp %51 : vector<8x1xi32> to vector<8x1xf32>
    %53 = arith.sitofp %46 : i32 to f32
    %cst_12 = arith.constant 1.000000e+00 : f32
    %54 = arith.maximumf %53, %cst_12 : f32
    %cst_13 = arith.constant 1.000000e+00 : f32
    %55 = arith.divf %cst_13, %54 : f32
    %56 = vector.broadcast %52 : vector<8x1xf32> to vector<8x128xf32>
    %57 = arith.mulf %48, %56 : vector<8x128xf32>
    %cst_14 = arith.constant dense<0.000000e+00> : vector<128xf32>
    %58 = vector.multi_reduction <add>, %57, %cst_14 [0] : vector<8x128xf32> to vector<128xf32>
    %59 = vector.shape_cast %58 : vector<128xf32> to vector<1x128xf32>
    %60 = vector.broadcast %55 : f32 to vector<1x128xf32>
    %61 = arith.mulf %59, %60 : vector<1x128xf32>
    %62 = arith.mulf %61, %2 : vector<1x128xf32>
    %63 = vector.broadcast %62 : vector<1x128xf32> to vector<8x128xf32>
    %64 = arith.subf %48, %63 : vector<8x128xf32>
    %65 = arith.mulf %64, %64 : vector<8x128xf32>
    %66 = vector.broadcast %52 : vector<8x1xf32> to vector<8x128xf32>
    %67 = arith.mulf %65, %66 : vector<8x128xf32>
    %cst_15 = arith.constant dense<0.000000e+00> : vector<128xf32>
    %68 = vector.multi_reduction <add>, %67, %cst_15 [0] : vector<8x128xf32> to vector<128xf32>
    %69 = vector.shape_cast %68 : vector<128xf32> to vector<1x128xf32>
    %70 = vector.broadcast %55 : f32 to vector<1x128xf32>
    %71 = arith.mulf %69, %70 : vector<1x128xf32>
    %cst_16 = arith.constant 9.99999974E-6 : f32
    %72 = vector.broadcast %cst_16 : f32 to vector<1x128xf32>
    %73 = arith.addf %71, %72 : vector<1x128xf32>
    %74 = math.rsqrt %73 : vector<1x128xf32>
    %75 = arith.mulf %0, %74 : vector<1x128xf32>
    %76 = vector.broadcast %75 : vector<1x128xf32> to vector<8x128xf32>
    %77 = arith.mulf %64, %76 : vector<8x128xf32>
    %78 = vector.broadcast %1 : vector<1x128xf32> to vector<8x128xf32>
    %79 = arith.addf %77, %78 : vector<8x128xf32>
    %80 = arith.index_cast %44 : i32 to index
    %c0_17 = arith.constant 0 : index
    %81 = vector.load %arg7[%80, %c0_17] : memref<24x128xf32, #tpu.memory_space<vmem>>, vector<8x128xf32>
    tpu.vector_store %arg7[%80, %c0_17], %79 {strides = array<i32>} : memref<24x128xf32, #tpu.memory_space<vmem>>, vector<8x128xf32>,
    %c2_i32 = arith.constant 2 : i32
    %82 = arith.index_cast %c2_i32 : i32 to index
    %83 = memref.load %arg1[%82] : memref<3xi32, #tpu.memory_space<smem>>
    %84 = arith.index_cast %c2_i32 : i32 to index
    %85 = memref.load %arg2[%84] : memref<3xi32, #tpu.memory_space<smem>>
    %86 = arith.index_cast %83 : i32 to index
    %c0_18 = arith.constant 0 : index
    %87 = vector.load %arg3[%86, %c0_18] : memref<24x128xf32, #tpu.memory_space<vmem>>, vector<8x128xf32>
    %88 = vector.broadcast %85 : i32 to vector<8x1xi32>
    %89 = arith.cmpi slt, %3, %88 : vector<8x1xi32>
    %90 = arith.extui %89 : vector<8x1xi1> to vector<8x1xi32>
    %91 = arith.sitofp %90 : vector<8x1xi32> to vector<8x1xf32>
    %92 = arith.sitofp %85 : i32 to f32
    %cst_19 = arith.constant 1.000000e+00 : f32
    %93 = arith.maximumf %92, %cst_19 : f32
    %cst_20 = arith.constant 1.000000e+00 : f32
    %94 = arith.divf %cst_20, %93 : f32
    %95 = vector.broadcast %91 : vector<8x1xf32> to vector<8x128xf32>
    %96 = arith.mulf %87, %95 : vector<8x128xf32>
    %cst_21 = arith.constant dense<0.000000e+00> : vector<128xf32>
    %97 = vector.multi_reduction <add>, %96, %cst_21 [0] : vector<8x128xf32> to vector<128xf32>
    %98 = vector.shape_cast %97 : vector<128xf32> to vector<1x128xf32>
    %99 = vector.broadcast %94 : f32 to vector<1x128xf32>
    %100 = arith.mulf %98, %99 : vector<1x128xf32>
    %101 = arith.mulf %100, %2 : vector<1x128xf32>
    %102 = vector.broadcast %101 : vector<1x128xf32> to vector<8x128xf32>
    %103 = arith.subf %87, %102 : vector<8x128xf32>
    %104 = arith.mulf %103, %103 : vector<8x128xf32>
    %105 = vector.broadcast %91 : vector<8x1xf32> to vector<8x128xf32>
    %106 = arith.mulf %104, %105 : vector<8x128xf32>
    %cst_22 = arith.constant dense<0.000000e+00> : vector<128xf32>
    %107 = vector.multi_reduction <add>, %106, %cst_22 [0] : vector<8x128xf32> to vector<128xf32>
    %108 = vector.shape_cast %107 : vector<128xf32> to vector<1x128xf32>
    %109 = vector.broadcast %94 : f32 to vector<1x128xf32>
    %110 = arith.mulf %108, %109 : vector<1x128xf32>
    %cst_23 = arith.constant 9.99999974E-6 : f32
    %111 = vector.broadcast %cst_23 : f32 to vector<1x128xf32>
    %112 = arith.addf %110, %111 : vector<1x128xf32>
    %113 = math.rsqrt %112 : vector<1x128xf32>
    %114 = arith.mulf %0, %113 : vector<1x128xf32>
    %115 = vector.broadcast %114 : vector<1x128xf32> to vector<8x128xf32>
    %116 = arith.mulf %103, %115 : vector<8x128xf32>
    %117 = vector.broadcast %1 : vector<1x128xf32> to vector<8x128xf32>
    %118 = arith.addf %116, %117 : vector<8x128xf32>
    %119 = arith.index_cast %83 : i32 to index
    %c0_24 = arith.constant 0 : index
    %120 = vector.load %arg7[%119, %c0_24] : memref<24x128xf32, #tpu.memory_space<vmem>>, vector<8x128xf32>
    tpu.vector_store %arg7[%119, %c0_24], %118 {strides = array<i32>} : memref<24x128xf32, #tpu.memory_space<vmem>>, vector<8x128xf32>,
    %c3_i32 = arith.constant 3 : i32
    return
  }
  func.func @transform_0(%arg0: i32, %arg1: memref<3xi32, #tpu.memory_space<smem>>, %arg2: memref<3xi32, #tpu.memory_space<smem>>) -> (i32, i32) {
    %c0_i32 = arith.constant 0 : i32
    %c0_i32_0 = arith.constant 0 : i32
    return %c0_i32, %arg0 : i32, i32
  }
  func.func @transform_1(%arg0: i32, %arg1: memref<3xi32, #tpu.memory_space<smem>>, %arg2: memref<3xi32, #tpu.memory_space<smem>>) -> (i32, i32) {
    %c0_i32 = arith.constant 0 : i32
    %c0_i32_0 = arith.constant 0 : i32
    return %c0_i32, %arg0 : i32, i32
  }
  func.func @transform_2(%arg0: i32, %arg1: memref<3xi32, #tpu.memory_space<smem>>, %arg2: memref<3xi32, #tpu.memory_space<smem>>) -> (i32, i32) {
    %c0_i32 = arith.constant 0 : i32
    %c0_i32_0 = arith.constant 0 : i32
    return %c0_i32, %arg0 : i32, i32
  }
  func.func @transform_3(%arg0: i32, %arg1: memref<3xi32, #tpu.memory_space<smem>>, %arg2: memref<3xi32, #tpu.memory_space<smem>>) -> (i32, i32) {
    %c0_i32 = arith.constant 0 : i32
    %c0_i32_0 = arith.constant 0 : i32
    return %c0_i32, %arg0 : i32, i32
  }
  func.func @transform_4(%arg0: i32, %arg1: memref<3xi32, #tpu.memory_space<smem>>, %arg2: memref<3xi32, #tpu.memory_space<smem>>) -> (i32, i32) {
    %c0_i32 = arith.constant 0 : i32
    %c0_i32_0 = arith.constant 0 : i32
    return %c0_i32, %arg0 : i32, i32
  }
}

</mosaic_0001>

<llo_original>
// kernel: tpu_custom_call.1
$region0: #{tpu_custom_call.1}
  #allocation0 [shape = 'u32[]', space=smem, size = 0x4, offset = 0x4, fixed_abs, tag = 'smem constant byte address 0x4 - core index']
  #allocation1 [shape = 'u32[144,128]{1,0:T(1,128)}', space=vmem, size = 0x12000, scoped, tag = 'internal scratch']
  #allocation2 [shape = 's32[1]{0}', space=sflag, size = 0x4, scoped, tag = 'scoped memory for tpu_custom_call.1']
  #allocation3 [shape = 'u8[512]{0}', space=smem, size = 0x200, scoped, tag = 'prefetched SMEM operand 0']
  #allocation4 [shape = 'u8[512]{0}', space=smem, size = 0x200, scoped, tag = 'prefetched SMEM operand 1']
  %s0 = inlined_call_operand.hbm [shape: s32[3], index: 0, kind: input, shape index: {}]
  %s1 = inlined_call_operand.vmem [shape: s32[3], index: 1, kind: input, shape index: {}]
  %s2 = inlined_call_operand.hbm [shape: f32[24,128], index: 2, kind: input, shape index: {}]
  %s3 = inlined_call_operand.vmem [shape: f32[1,128], index: 3, kind: input, shape index: {}]
  %s4 = inlined_call_operand.vmem [shape: f32[1,128], index: 4, kind: input, shape index: {}]
  %s5 = inlined_call_operand.vmem [shape: f32[1,128], index: 5, kind: input, shape index: {}]
  %s6 = inlined_call_operand.hbm [shape: f32[24,128], index: 6, kind: output, shape index: {}]
  %s7 = sld [smem:[#allocation0]]
  $region30: #{tpu_custom_call.1} parent=0
    _
  %s9 = ssub.s32 1, %s7
  %s10 = scalar_select 0, %s9, %s7
  %12 = dma.hbm_to_smem %s0, 16, [#allocation3], [#allocation2]
  %s13 = sshll.u32 %s1, 4
  %s14 = int_to_ptr.vmem [resolvable:$true] %s13
  %16 = dma.vmem_to_smem %s14, 16, [#allocation4], [#allocation2]
  %17 = dma.done [#allocation2], 32
  %18 = sfence
  $region1: #{tpu_custom_call.1} parent=0
    #allocation5 [shape = 'u8[12288]{0}', space=vmem, size = 0x3000, scoped, tag = 'input window, operand 2, single buffered']
    #allocation6 [shape = 's32[1]{0}', space=sflag, size = 0x4, scoped, tag = 'scoped memory for tpu_custom_call.1']
    #allocation7 [shape = 's32[1]{0}', space=sflag, size = 0x4, scoped, tag = 'scoped memory for tpu_custom_call.1']
    #allocation8 [shape = 'u8[12288]{0}', space=vmem, size = 0x3000, scoped, tag = 'output window, operand 0, single buffered']
    %19 = vsyncpa [#allocation6], 0
    %20 = vsyncpa [#allocation7], 0
    // Predicated region
    $region2: #{tpu_custom_call.1} parent=1 // pred_check
      _
    $region3: #{tpu_custom_call.1} parent=1 // pred_check_branch
      %22 = sbr.rel (0) target = $region5
    $region4: #{tpu_custom_call.1} parent=1 // pred_region
      %s24 = ssub.s32 384, 384
      %25 = vsyncadd [#allocation6], %s24
      %s26 = sshll.u32 [#allocation5], 4
      %s27 = int_to_ptr.vmem [resolvable:$true] %s26
      %32 = dma.hbm_to_vmem [thread:$0]  %s2, 384, %s27, [#allocation6], 128, 128, 8
    $region5: #{tpu_custom_call.1} parent=1 // pred_fallthru
      _
    // Predicated region
    $region6: #{tpu_custom_call.1} parent=1 // pred_check
      _
    $region7: #{tpu_custom_call.1} parent=1 // pred_check_branch
      %34 = sbr.rel (0) target = $region9
    $region8: #{tpu_custom_call.1} parent=1 // pred_region
      _
    $region9: #{tpu_custom_call.1} parent=1 // pred_fallthru
      _
    // Predicated region
    $region10: #{tpu_custom_call.1} parent=1 // pred_check
      _
    $region11: #{tpu_custom_call.1} parent=1 // pred_check_branch
      %36 = sbr.rel (0) target = $region13
    $region12: #{tpu_custom_call.1} parent=1 // pred_region
      _
    $region13: #{tpu_custom_call.1} parent=1 // pred_fallthru
      _
    // Predicated region
    $region14: #{tpu_custom_call.1} parent=1 // pred_check
      _
    $region15: #{tpu_custom_call.1} parent=1 // pred_check_branch
      %38 = sbr.rel (0) target = $region17
    $region16: #{tpu_custom_call.1} parent=1 // pred_region
      _
    $region17: #{tpu_custom_call.1} parent=1 // pred_fallthru
      _
    // Predicated region
    $region18: #{tpu_custom_call.1} parent=1 // pred_check
      _
    $region19: #{tpu_custom_call.1} parent=1 // pred_check_branch
      %40 = sbr.rel (0) target = $region21
    $region20: #{tpu_custom_call.1} parent=1 // pred_region
      %41 = dma.done [#allocation6], 384
    $region21: #{tpu_custom_call.1} parent=1 // pred_fallthru
      _
    %v42 = vld [vmem:[%s3] sm:$0x1]
    %v43 = vld [vmem:[%s4] sm:$0x1]
    %v44 = vld [vmem:[%s5] sm:$0x1]
    %v45 = vlaneseq
    %v46 = vshrl.u32 %v45, 7
    %s47 = sld [smem:[#allocation3]]
    %s48 = sld [smem:[#allocation4]]
    %s49 = scalar_lea.vmem [#allocation5], %s47
    %v50 = vld [vmem:[%s49] sm:$0xff]
    %v51 = vstv %s48
    %vm52 = vcmp.lt.s32.totalorder %v46, %v51
    %v53 = vsel %vm52, 1, 0
    %v54 = vcvt.s32.f32 %v53
    %s55 = scvt.s32.f32 %s48
    %s56 = smax.f32 %s55, 1.0
    %v57 = vstv %s56
    %v58 = vrcp.pop %v57
    %s59 = vtos %v58
    %v60 = vmul.f32 %v50, %v54
    %v61 = vrot.slane %v60, 4
    %v62 = vadd.f32 %v60, %v61
    %v63 = vrot.slane %v62, 2
    %v64 = vadd.f32 %v62, %v63
    %v65 = vrot.slane %v64, 1
    %v66 = vadd.f32 %v64, %v65
    %v67 = vstv %s59
    %v68 = vmul.f32 %v66, %v67
    %v69 = vmul.f32 %v68, %v44
    %v70 = vlaneseq
    %v71 = vshrl.u32 %v70, 7
    %v72 = vsub.s32 0, %v71
    %v73 = vrot.slane %v69, %v72
    %v74 = vsub.f32 %v50, %v73
    %v75 = vmul.f32 %v74, %v74
    %v76 = vmul.f32 %v75, %v54
    %v77 = vrot.slane %v76, 4
    %v78 = vadd.f32 %v76, %v77
    %v79 = vrot.slane %v78, 2
    %v80 = vadd.f32 %v78, %v79
    %v81 = vrot.slane %v80, 1
    %v82 = vadd.f32 %v80, %v81
    %v83 = vmul.f32 %v82, %v67
    %v84 = vadd.f32 %v83, 1e-05
    %v85 = vrsqrt.pop %v84
    %v86 = vmul.f32 %v42, %v85
    %v88 = vlaneseq
    %v89 = vshrl.u32 %v88, 7
    %v90 = vsub.s32 0, %v89
    %v91 = vrot.slane %v86, %v90
    %v93 = vmul.f32 %v74, %v91
    %v95 = vlaneseq
    %v96 = vshrl.u32 %v95, 7
    %v97 = vsub.s32 0, %v96
    %v98 = vrot.slane %v43, %v97
    %v100 = vadd.f32 %v93, %v98
    %s101 = scalar_lea.vmem [#allocation8], %s47
    %102 = vst [vmem:[%s101] sm:$0xff] %v100
    %s103 = sld [smem:[#allocation3 + $0x1]]
    %s104 = sld [smem:[#allocation4 + $0x1]]
    %s105 = scalar_lea.vmem [#allocation5], %s103
    %v106 = vld [vmem:[%s105] sm:$0xff]
    %v107 = vstv %s104
    %vm108 = vcmp.lt.s32.totalorder %v46, %v107
    %v109 = vsel %vm108, 1, 0
    %v110 = vcvt.s32.f32 %v109
    %s111 = scvt.s32.f32 %s104
    %s112 = smax.f32 %s111, 1.0
    %v113 = vstv %s112
    %v114 = vrcp.pop %v113
    %s115 = vtos %v114
    %v116 = vmul.f32 %v106, %v110
    %v117 = vrot.slane %v116, 4
    %v118 = vadd.f32 %v116, %v117
    %v119 = vrot.slane %v118, 2
    %v120 = vadd.f32 %v118, %v119
    %v121 = vrot.slane %v120, 1
    %v122 = vadd.f32 %v120, %v121
    %v123 = vstv %s115
    %v124 = vmul.f32 %v122, %v123
    %v125 = vmul.f32 %v124, %v44
    %v126 = vlaneseq
    %v127 = vshrl.u32 %v126, 7
    %v128 = vsub.s32 0, %v127
    %v129 = vrot.slane %v125, %v128
    %v130 = vsub.f32 %v106, %v129
    %v131 = vmul.f32 %v130, %v130
    %v132 = vmul.f32 %v131, %v110
    %v133 = vrot.slane %v132, 4
    %v134 = vadd.f32 %v132, %v133
    %v135 = vrot.slane %v134, 2
    %v136 = vadd.f32 %v134, %v135
    %v137 = vrot.slane %v136, 1
    %v138 = vadd.f32 %v136, %v137
    %v139 = vmul.f32 %v138, %v123
    %v140 = vadd.f32 %v139, 1e-05
    %v141 = vrsqrt.pop %v140
    %v142 = vmul.f32 %v42, %v141
    %v144 = vlaneseq
    %v145 = vshrl.u32 %v144, 7
    %v146 = vsub.s32 0, %v145
    %v147 = vrot.slane %v142, %v146
    %v149 = vmul.f32 %v130, %v147
    %v150 = vadd.f32 %v149, %v98
    %s151 = scalar_lea.vmem [#allocation8], %s103
    %152 = vst [vmem:[%s151] sm:$0xff] %v150
    %s153 = sld [smem:[#allocation3 + $0x2]]
    %s154 = sld [smem:[#allocation4 + $0x2]]
    %s155 = scalar_lea.vmem [#allocation5], %s153
    %v156 = vld [vmem:[%s155] sm:$0xff]
    %v157 = vstv %s154
    %vm158 = vcmp.lt.s32.totalorder %v46, %v157
    %v159 = vsel %vm158, 1, 0
    %v160 = vcvt.s32.f32 %v159
    %s161 = scvt.s32.f32 %s154
    %s162 = smax.f32 %s161, 1.0
    %v163 = vstv %s162
    %v164 = vrcp.pop %v163
    %s165 = vtos %v164
    %v166 = vmul.f32 %v156, %v160
    %v167 = vrot.slane %v166, 4
    %v168 = vadd.f32 %v166, %v167
    %v169 = vrot.slane %v168, 2
    %v170 = vadd.f32 %v168, %v169
    %v171 = vrot.slane %v170, 1
    %v172 = vadd.f32 %v170, %v171
    %v173 = vstv %s165
    %v174 = vmul.f32 %v172, %v173
    %v175 = vmul.f32 %v174, %v44
    %v176 = vlaneseq
    %v177 = vshrl.u32 %v176, 7
    %v178 = vsub.s32 0, %v177
    %v179 = vrot.slane %v175, %v178
    %v180 = vsub.f32 %v156, %v179
    %v181 = vmul.f32 %v180, %v180
    %v182 = vmul.f32 %v181, %v160
    %v183 = vrot.slane %v182, 4
    %v184 = vadd.f32 %v182, %v183
    %v185 = vrot.slane %v184, 2
    %v186 = vadd.f32 %v184, %v185
    %v187 = vrot.slane %v186, 1
    %v188 = vadd.f32 %v186, %v187
    %v189 = vmul.f32 %v188, %v173
    %v190 = vadd.f32 %v189, 1e-05
    %v191 = vrsqrt.pop %v190
    %v192 = vmul.f32 %v42, %v191
    %v194 = vlaneseq
    %v195 = vshrl.u32 %v194, 7
    %v196 = vsub.s32 0, %v195
    %v197 = vrot.slane %v192, %v196
    %v199 = vmul.f32 %v180, %v197
    %v200 = vadd.f32 %v199, %v98
    %s201 = scalar_lea.vmem [#allocation8], %s153
    %202 = vst [vmem:[%s201] sm:$0xff] %v200
    // Predicated region
    $region22: #{tpu_custom_call.1} parent=1 // pred_check
      _
    $region23: #{tpu_custom_call.1} parent=1 // pred_check_branch
      %204 = sbr.rel (0) target = $region25
    $region24: #{tpu_custom_call.1} parent=1 // pred_region
      %s206 = ssub.s32 384, 384
      %207 = vsyncadd [#allocation7], %s206
      %s208 = sshll.u32 [#allocation8], 4
      %s209 = int_to_ptr.vmem [resolvable:$true] %s208
      %214 = dma.vmem_to_hbm [thread:$0]  %s209, 384, %s6, [#allocation7], 128, 128, 8
    $region25: #{tpu_custom_call.1} parent=1 // pred_fallthru
      _
    // Predicated region
    $region26: #{tpu_custom_call.1} parent=1 // pred_check
      _
    $region27: #{tpu_custom_call.1} parent=1 // pred_check_branch
      %216 = sbr.rel (0) target = $region29
    $region28: #{tpu_custom_call.1} parent=1 // pred_region
      %217 = dma.done [#allocation7], 384
    $region29: #{tpu_custom_call.1} parent=1 // pred_fallthru
      _
    %218 = vsyncpa [#allocation6], 1
    %219 = vsyncpa [#allocation7], 1

</llo_original>
